<compile_context>
chip_gen: v6e
topology: v6e:2x2x1
jax: 0.10.0
libtpu: 0.0.40
codegen_flags: <defaults>
</compile_context>

<pallas_src>
import functools

import jax
import jax.numpy as jnp
from jax.experimental import pallas as pl
from jax.experimental.pallas import tpu as pltpu

_LANES = 128


# ---------------------------------------------------------------------------
# Kernel A: per-core partial spatial sums of (x1 + x2 + x3), ragged tail masked.
# ---------------------------------------------------------------------------
def _pool_partial_kernel(x1_ref, x2_ref, x3_ref, part_ref, acc_ref, *,
                         n_k, tile_s, total_s, need_mask):
    k = pl.program_id(1)

    @pl.when(k == 0)
    def _():
        acc_ref[...] = jnp.zeros_like(acc_ref)

    B, C, _ = acc_ref.shape
    if need_mask:
        # logical (unclamped) block index -> spatial offset of this tile
        start = (pl.program_id(0) * n_k + k) * tile_s
        lane = jax.lax.broadcasted_iota(jnp.int32, (B, C, _LANES), 2)

    acc = acc_ref[...]                                       # (B, C, 128) f32
    for c0 in range(0, tile_s, _LANES):                      # static slices; no big temps
        s = (x1_ref[:, :, c0:c0 + _LANES].astype(jnp.float32)
             + x2_ref[:, :, c0:c0 + _LANES].astype(jnp.float32)
             + x3_ref[:, :, c0:c0 + _LANES].astype(jnp.float32))
        if need_mask:
            # zero garbage lanes of the partial edge block / clamped duplicate blocks
            s = jnp.where(lane < (total_s - start - c0), s, 0.0)
        acc = acc + s
    acc_ref[...] = acc

    @pl.when(k == pl.num_programs(1) - 1)
    def _():
        # single cross-lane reduce per core (XLU is idle in this HBM-bound kernel)
        part_ref[...] = jnp.sum(acc_ref[...], axis=-1)[None]  # (1, B, C)


# ---------------------------------------------------------------------------
# Kernel B: streamed weighted combine with VMEM-resident, pre-broadcast weights.
# ---------------------------------------------------------------------------
def _combine_kernel(w1_ref, w2_ref, w3_ref, x1_ref, x2_ref, x3_ref, o_ref, *, tile_s):
    w1 = w1_ref[...]                                         # (B, C, 128) f32, resident
    w2 = w2_ref[...]
    w3 = w3_ref[...]
    for c0 in range(0, tile_s, _LANES):                      # per-chunk: 3 vld/3 vmul/2 vadd/1 vst
        v = (x1_ref[:, :, c0:c0 + _LANES].astype(jnp.float32) * w1
             + x2_ref[:, :, c0:c0 + _LANES].astype(jnp.float32) * w2
             + x3_ref[:, :, c0:c0 + _LANES].astype(jnp.float32) * w3)
        o_ref[:, :, c0:c0 + _LANES] = v.astype(o_ref.dtype)


def se_attention_3d(x1, x2, x3, fc1_w, fc2_w, *, num_cores=2, max_tile_s=None):
    """fc1_w: (C, C//reduction); fc2_w: (C//reduction, 3*C)  (i.e. torch weight.T)."""
    B, C, D, H, W = x1.shape
    S = D * H * W
    itemsize = jnp.dtype(x1.dtype).itemsize

    # ------- tile / grid planning (HBM-bound: biggest 128-multiple tile in VMEM) -------
    try:
        vmem_cap = int(pltpu.get_tpu_info().vmem_capacity_bytes)
    except Exception:                       # conservative fallback (v7x: 64 MiB / core)
        vmem_cap = 64 * 1024 * 1024
    vmem_budget = max(16 * 2 ** 20, min(100 * 2 ** 20, vmem_cap - 8 * 2 ** 20))
    # pass 2 streams 4 double-buffered (B, C, tS) arrays in x.dtype (3 in + 1 out);
    # 16 tile-sized buffers of budget leaves headroom for temporaries & resident weights.
    bytes_per_lane_col = max(1, B * C * itemsize)
    max_ts = max(_LANES, (vmem_budget // (16 * bytes_per_lane_col)) // _LANES * _LANES)
    s128 = pl.cdiv(S, _LANES) * _LANES
    tS = min(8192, max_ts, s128)
    if max_tile_s is not None:              # test hook: force small tiles
        tS = max(_LANES, min(tS, max_tile_s // _LANES * _LANES))
    n_blocks = pl.cdiv(S, tS)

    P = num_cores if n_blocks >= num_cores else 1            # megacore split for pass 1
    n_k = pl.cdiv(n_blocks, P)
    need_mask = (S % tS != 0) or (P * n_k != n_blocks)

    vmem_limit = int(min(vmem_cap - 4 * 2 ** 20,
                         max(32 * 2 ** 20, 18 * B * C * tS * itemsize + 4 * 2 ** 20)))

    x1f = x1.reshape(B, C, S)               # free: collapses contiguous trailing dims
    x2f = x2.reshape(B, C, S)
    x3f = x3.reshape(B, C, S)

    # ---------------- pass 1: per-core partial spatial sums ----------------------
    if P * n_k == n_blocks:
        x_map_p1 = lambda p, k: (0, 0, p * n_k + k)
    else:
        # clamp so no block is fetched fully out-of-bounds; duplicates are masked in-kernel
        x_map_p1 = lambda p, k: (0, 0, jnp.minimum(p * n_k + k, n_blocks - 1))
    x_spec_p1 = pl.BlockSpec((B, C, tS), x_map_p1)

    in_bytes = 3 * B * C * S * itemsize
    partials = pl.pallas_call(
        functools.partial(_pool_partial_kernel, n_k=n_k, tile_s=tS, total_s=S,
                          need_mask=need_mask),
        out_shape=jax.ShapeDtypeStruct((P, B, C), jnp.float32),
        grid_spec=pltpu.PrefetchScalarGridSpec(
            num_scalar_prefetch=0,
            grid=(P, n_k),
            in_specs=[x_spec_p1, x_spec_p1, x_spec_p1],
            out_specs=pl.BlockSpec((1, B, C), lambda p, k: (p, 0, 0)),
            scratch_shapes=[pltpu.VMEM((B, C, _LANES), jnp.float32)]),
        compiler_params=pltpu.CompilerParams(
            dimension_semantics=("parallel", "arbitrary"),
            vmem_limit_bytes=vmem_limit),
        cost_estimate=pl.CostEstimate(
            flops=3 * B * C * S, transcendentals=0,
            bytes_accessed=in_bytes + P * B * C * 4),
    )(x1f, x2f, x3f)

    # --------- SE MLP once in XLA (tiny (B,C)-row matmuls; pass 2 skips the MXU) --------
    pooled = jnp.sum(partials, axis=0) * (1.0 / S)                       # AdaptiveAvgPool3d(1)
    h = jnp.maximum(jnp.dot(pooled, fc1_w.astype(jnp.float32)), 0.0)     # ReLU(Linear1)
    y = jax.nn.sigmoid(jnp.dot(h, fc2_w.astype(jnp.float32)))            # (B, 3C)
    w1 = jnp.broadcast_to(y[:, :C, None], (B, C, _LANES))                # lane-broadcast once
    w2 = jnp.broadcast_to(y[:, C:2 * C, None], (B, C, _LANES))
    w3 = jnp.broadcast_to(y[:, 2 * C:, None], (B, C, _LANES))

    # ----------------- pass 2: streamed weighted combine --------------------------------
    x_spec_p2 = pl.BlockSpec((B, C, tS), lambda i: (0, 0, i))
    w_spec = pl.BlockSpec((B, C, _LANES), lambda i: (0, 0, 0))           # VMEM-resident

    out = pl.pallas_call(
        functools.partial(_combine_kernel, tile_s=tS),
        out_shape=jax.ShapeDtypeStruct((B, C, S), x1.dtype),             # no padding / slicing
        grid_spec=pltpu.PrefetchScalarGridSpec(
            num_scalar_prefetch=0,
            grid=(n_blocks,),
            in_specs=[w_spec, w_spec, w_spec, x_spec_p2, x_spec_p2, x_spec_p2],
            out_specs=pl.BlockSpec((B, C, tS), lambda i: (0, 0, i))),
        compiler_params=pltpu.CompilerParams(
            dimension_semantics=("parallel",),
            vmem_limit_bytes=vmem_limit),
        cost_estimate=pl.CostEstimate(
            flops=6 * B * C * S, transcendentals=0,
            bytes_accessed=in_bytes + B * C * S * itemsize + 3 * B * C * _LANES * 4),
    )(w1, w2, w3, x1f, x2f, x3f)

    return out.reshape(B, C, D, H, W)


# ---------------------------------------------------------------------------
# Pure-JAX reference (mirrors the PyTorch forward semantics exactly).
# ---------------------------------------------------------------------------
def se_attention_3d_ref(x1, x2, x3, fc1_w, fc2_w):
    B, C = x1.shape[:2]
    x = x1 + x2 + x3
    pooled = jnp.mean(x.reshape(B, C, -1), axis=-1)            # AdaptiveAvgPool3d(1)
    h = jnp.maximum(pooled @ fc1_w, 0.0)
    y = jax.nn.sigmoid(h @ fc2_w)                              # (B, 3C)
    w1 = y[:, :C].reshape(B, C, 1, 1, 1)
    w2 = y[:, C:2 * C].reshape(B, C, 1, 1, 1)
    w3 = y[:, 2 * C:].reshape(B, C, 1, 1, 1)
    return x1 * w1 + x2 * w2 + x3 * w3


def _run_case(key, B, C, reduction, D, H, W, **kw):
    Cr = max(1, C // reduction)
    k1, k2, k3, kw1, kw2 = jax.random.split(key, 5)
    x1 = jax.random.normal(k1, (B, C, D, H, W), jnp.float32)
    x2 = jax.random.normal(k2, (B, C, D, H, W), jnp.float32)
    x3 = jax.random.normal(k3, (B, C, D, H, W), jnp.float32)
    # Deterministic synthetic Linear weights, stored as (in, out) so y = x @ W.
    fc1_w = 0.05 * jax.random.normal(kw1, (C, Cr), jnp.float32)
    fc2_w = 0.05 * jax.random.normal(kw2, (Cr, 3 * C), jnp.float32)

    out = jax.block_until_ready(se_attention_3d(x1, x2, x3, fc1_w, fc2_w, **kw))
    ref = se_attention_3d_ref(x1, x2, x3, fc1_w, fc2_w)
    assert out.shape == (B, C, D, H, W)
    assert jnp.allclose(out, ref, rtol=1e-4, atol=1e-5), (
        float(jnp.max(jnp.abs(out - ref))))


if __name__ == "__main__":
    key = jax.random.PRNGKey(0)
    k_a, k_b = jax.random.split(key)
    # Case 1: divisible spatial (S = 256), single tile per pass.
    _run_case(k_a, B=2, C=32, reduction=8, D=4, H=8, W=8)
    # Case 2: ragged spatial (S = 300) with forced 128-lane tiles: exercises the
    # in-kernel edge-block masking, the dropped OOB output write, and the clamped
    # duplicate block on the 2-core split (no wrapper padding anywhere).
    _run_case(k_b, B=2, C=32, reduction=8, D=2, H=10, W=15, max_tile_s=128)
    print("KERNEL_OK")
</pallas_src>

<mosaic_0001>
module attributes {stable_mosaic.version = 11 : i64} {
  func.func @_pool_partial_kernel(%arg0: i32, %arg1: i32, %arg2: memref<2x32x256xf32, #tpu.memory_space<vmem>>, %arg3: memref<2x32x256xf32, #tpu.memory_space<vmem>>, %arg4: memref<2x32x256xf32, #tpu.memory_space<vmem>>, %arg5: memref<1x2x32xf32, #tpu.memory_space<vmem>>, %arg6: memref<2x32x128xf32, #tpu.memory_space<vmem>>) attributes {dimension_semantics = [#tpu.dimension_semantics<parallel>, #tpu.dimension_semantics<arbitrary>], iteration_bounds = array<i64: 1, 1>, scalar_prefetch = 0 : i64, scratch_operands = 1 : i64, tpu.core_type = #tpu.core_type<tc>, window_params = [{transform_indices = @transform_0, window_bounds = array<i64: 2, 32, 256>}, {transform_indices = @transform_1, window_bounds = array<i64: 2, 32, 256>}, {transform_indices = @transform_2, window_bounds = array<i64: 2, 32, 256>}, {transform_indices = @transform_3, window_bounds = array<i64: 1, 2, 32>}]} {
    %c0_i32 = arith.constant 0 : i32
    %0 = arith.cmpi eq, %arg1, %c0_i32 : i32
    %1 = arith.extui %0 : i1 to i32
    %c0_i32_0 = arith.constant 0 : i32
    %2 = arith.cmpi ne, %1, %c0_i32_0 : i32
    scf.if %2 {
      %cst = arith.constant 0.000000e+00 : f32
      %20 = vector.broadcast %cst : f32 to vector<2x32x128xf32>
      %c0_25 = arith.constant 0 : index
      %c0_26 = arith.constant 0 : index
      %c0_27 = arith.constant 0 : index
      %21 = vector.load %arg6[%c0_25, %c0_26, %c0_27] : memref<2x32x128xf32, #tpu.memory_space<vmem>>, vector<2x32x128xf32>
      tpu.vector_store %arg6[%c0_25, %c0_26, %c0_27], %20 {strides = array<i32>} : memref<2x32x128xf32, #tpu.memory_space<vmem>>, vector<2x32x128xf32>,
    } else {
    }
    %c0 = arith.constant 0 : index
    %c0_1 = arith.constant 0 : index
    %c0_2 = arith.constant 0 : index
    %3 = vector.load %arg6[%c0, %c0_1, %c0_2] : memref<2x32x128xf32, #tpu.memory_space<vmem>>, vector<2x32x128xf32>
    %c0_3 = arith.constant 0 : index
    %c0_4 = arith.constant 0 : index
    %c0_5 = arith.constant 0 : index
    %4 = vector.load %arg2[%c0_3, %c0_4, %c0_5] : memref<2x32x256xf32, #tpu.memory_space<vmem>>, vector<2x32x128xf32>
    %c0_6 = arith.constant 0 : index
    %c0_7 = arith.constant 0 : index
    %c0_8 = arith.constant 0 : index
    %5 = vector.load %arg3[%c0_6, %c0_7, %c0_8] : memref<2x32x256xf32, #tpu.memory_space<vmem>>, vector<2x32x128xf32>
    %6 = arith.addf %4, %5 : vector<2x32x128xf32>
    %c0_9 = arith.constant 0 : index
    %c0_10 = arith.constant 0 : index
    %c0_11 = arith.constant 0 : index
    %7 = vector.load %arg4[%c0_9, %c0_10, %c0_11] : memref<2x32x256xf32, #tpu.memory_space<vmem>>, vector<2x32x128xf32>
    %8 = arith.addf %6, %7 : vector<2x32x128xf32>
    %9 = arith.addf %3, %8 : vector<2x32x128xf32>
    %c0_12 = arith.constant 0 : index
    %c0_13 = arith.constant 0 : index
    %c128 = arith.constant 128 : index
    %10 = vector.load %arg2[%c0_12, %c0_13, %c128] : memref<2x32x256xf32, #tpu.memory_space<vmem>>, vector<2x32x128xf32>
    %c0_14 = arith.constant 0 : index
    %c0_15 = arith.constant 0 : index
    %c128_16 = arith.constant 128 : index
    %11 = vector.load %arg3[%c0_14, %c0_15, %c128_16] : memref<2x32x256xf32, #tpu.memory_space<vmem>>, vector<2x32x128xf32>
    %12 = arith.addf %10, %11 : vector<2x32x128xf32>
    %c0_17 = arith.constant 0 : index
    %c0_18 = arith.constant 0 : index
    %c128_19 = arith.constant 128 : index
    %13 = vector.load %arg4[%c0_17, %c0_18, %c128_19] : memref<2x32x256xf32, #tpu.memory_space<vmem>>, vector<2x32x128xf32>
    %14 = arith.addf %12, %13 : vector<2x32x128xf32>
    %15 = arith.addf %9, %14 : vector<2x32x128xf32>
    %c0_20 = arith.constant 0 : index
    %c0_21 = arith.constant 0 : index
    %c0_22 = arith.constant 0 : index
    %16 = vector.load %arg6[%c0_20, %c0_21, %c0_22] : memref<2x32x128xf32, #tpu.memory_space<vmem>>, vector<2x32x128xf32>
    tpu.vector_store %arg6[%c0_20, %c0_21, %c0_22], %15 {strides = array<i32>} : memref<2x32x128xf32, #tpu.memory_space<vmem>>, vector<2x32x128xf32>,
    %c0_i32_23 = arith.constant 0 : i32
    %17 = arith.cmpi eq, %arg1, %c0_i32_23 : i32
    %18 = arith.extui %17 : i1 to i32
    %c0_i32_24 = arith.constant 0 : i32
    %19 = arith.cmpi ne, %18, %c0_i32_24 : i32
    scf.if %19 {
      %c0_25 = arith.constant 0 : index
      %c0_26 = arith.constant 0 : index
      %c0_27 = arith.constant 0 : index
      %20 = vector.load %arg6[%c0_25, %c0_26, %c0_27] : memref<2x32x128xf32, #tpu.memory_space<vmem>>, vector<2x32x128xf32>
      %cst = arith.constant dense<0.000000e+00> : vector<2x32xf32>
      %21 = vector.multi_reduction <add>, %20, %cst [2] : vector<2x32x128xf32> to vector<2x32xf32>
      %22 = vector.shape_cast %21 : vector<2x32xf32> to vector<1x2x32xf32>
      %c0_28 = arith.constant 0 : index
      %c0_29 = arith.constant 0 : index
      %c0_30 = arith.constant 0 : index
      %23 = vector.load %arg5[%c0_28, %c0_29, %c0_30] : memref<1x2x32xf32, #tpu.memory_space<vmem>>, vector<1x2x32xf32>
      tpu.vector_store %arg5[%c0_28, %c0_29, %c0_30], %22 {strides = array<i32>} : memref<1x2x32xf32, #tpu.memory_space<vmem>>, vector<1x2x32xf32>,
    } else {
    }
    return
  }
  func.func @transform_0(%arg0: i32, %arg1: i32) -> (i32, i32, i32) {
    %c1_i32 = arith.constant 1 : i32
    %0 = arith.muli %arg0, %c1_i32 : i32
    %1 = arith.addi %0, %arg1 : i32
    %c0_i32 = arith.constant 0 : i32
    %c0_i32_0 = arith.constant 0 : i32
    %c0_i32_1 = arith.constant 0 : i32
    return %c0_i32, %c0_i32_0, %1 : i32, i32, i32
  }
  func.func @transform_1(%arg0: i32, %arg1: i32) -> (i32, i32, i32) {
    %c1_i32 = arith.constant 1 : i32
    %0 = arith.muli %arg0, %c1_i32 : i32
    %1 = arith.addi %0, %arg1 : i32
    %c0_i32 = arith.constant 0 : i32
    %c0_i32_0 = arith.constant 0 : i32
    %c0_i32_1 = arith.constant 0 : i32
    return %c0_i32, %c0_i32_0, %1 : i32, i32, i32
  }
  func.func @transform_2(%arg0: i32, %arg1: i32) -> (i32, i32, i32) {
    %c1_i32 = arith.constant 1 : i32
    %0 = arith.muli %arg0, %c1_i32 : i32
    %1 = arith.addi %0, %arg1 : i32
    %c0_i32 = arith.constant 0 : i32
    %c0_i32_0 = arith.constant 0 : i32
    %c0_i32_1 = arith.constant 0 : i32
    return %c0_i32, %c0_i32_0, %1 : i32, i32, i32
  }
  func.func @transform_3(%arg0: i32, %arg1: i32) -> (i32, i32, i32) {
    %c0_i32 = arith.constant 0 : i32
    %c0_i32_0 = arith.constant 0 : i32
    %c0_i32_1 = arith.constant 0 : i32
    return %arg0, %c0_i32, %c0_i32_0 : i32, i32, i32
  }
}

</mosaic_0001>

<llo_original>
// kernel: tpu_custom_call.1
$region0: #{tpu_custom_call.1}
  #allocation0 [shape = 'u32[]', space=smem, size = 0x4, offset = 0x4, fixed_abs, tag = 'smem constant byte address 0x4 - core index']
  #allocation1 [shape = 'u32[144,128]{1,0:T(1,128)}', space=vmem, size = 0x12000, scoped, tag = 'internal scratch']
  #allocation2 [shape = 'f32[2,32,128]{2,1,0:T(8,128)}', space=vmem, size = 0x8000, scoped, tag = 'scratch operand']
  %s0 = inlined_call_operand.hbm [shape: f32[2,32,256], index: 0, kind: input, shape index: {}]
  %s1 = inlined_call_operand.hbm [shape: f32[2,32,256], index: 1, kind: input, shape index: {}]
  %s2 = inlined_call_operand.hbm [shape: f32[2,32,256], index: 2, kind: input, shape index: {}]
  %s3 = inlined_call_operand.hbm [shape: f32[1,2,32], index: 3, kind: output, shape index: {}]
  %s4 = sld [smem:[#allocation0]]
  $region42: #{tpu_custom_call.1} parent=0
    _
  %s6 = ssub.s32 1, %s4
  %s7 = scalar_select 0, %s6, %s4
  $region1: #{tpu_custom_call.1} parent=0
    #allocation3 [shape = 'u8[65536]{0}', space=vmem, size = 0x10000, scoped, tag = 'input window, operand 0, single buffered']
    #allocation4 [shape = 's32[1]{0}', space=sflag, size = 0x4, scoped, tag = 'scoped memory for tpu_custom_call.1']
    #allocation5 [shape = 's32[1]{0}', space=sflag, size = 0x4, scoped, tag = 'scoped memory for tpu_custom_call.1']
    #allocation6 [shape = 'u8[65536]{0}', space=vmem, size = 0x10000, scoped, tag = 'input window, operand 1, single buffered']
    #allocation7 [shape = 's32[1]{0}', space=sflag, size = 0x4, scoped, tag = 'scoped memory for tpu_custom_call.1']
    #allocation8 [shape = 'u8[65536]{0}', space=vmem, size = 0x10000, scoped, tag = 'input window, operand 2, single buffered']
    #allocation9 [shape = 'u8[1024]{0}', space=vmem, size = 0x400, scoped, tag = 'output window, operand 0, single buffered']
    %8 = vsyncpa [#allocation4], 0
    %9 = vsyncpa [#allocation7], 0
    %10 = vsyncpa [#allocation5], 0
    // Predicated region
    $region2: #{tpu_custom_call.1} parent=1 // pred_check
      _
    $region3: #{tpu_custom_call.1} parent=1 // pred_check_branch
      %12 = sbr.rel (0) target = $region5
    $region4: #{tpu_custom_call.1} parent=1 // pred_region
      %s13 = sadd.s32 0, 0
      %s14 = smul.u32 2, %s13
      %s16 = ssub.s32 2048, 2048
      %17 = vsyncadd [#allocation4], %s16
      %s18 = smul.addr %s14, 128
      %s19 = scalar_lea.hbm %s0, %s18
      %s20 = sshll.u32 [#allocation3], 4
      %s21 = int_to_ptr.vmem [resolvable:$true] %s20
      %26 = dma.hbm_to_vmem [thread:$0]  %s19, 2048, %s21, [#allocation4], 256, 256, 16
    $region5: #{tpu_custom_call.1} parent=1 // pred_fallthru
      _
    // Predicated region
    $region6: #{tpu_custom_call.1} parent=1 // pred_check
      _
    $region7: #{tpu_custom_call.1} parent=1 // pred_check_branch
      %28 = sbr.rel (0) target = $region9
    $region8: #{tpu_custom_call.1} parent=1 // pred_region
      %s29 = sadd.s32 0, 0
      %s30 = smul.u32 2, %s29
      %s32 = ssub.s32 2048, 2048
      %33 = vsyncadd [#allocation7], %s32
      %s34 = smul.addr %s30, 128
      %s35 = scalar_lea.hbm %s1, %s34
      %s36 = sshll.u32 [#allocation6], 4
      %s37 = int_to_ptr.vmem [resolvable:$true] %s36
      %42 = dma.hbm_to_vmem [thread:$0]  %s35, 2048, %s37, [#allocation7], 256, 256, 16
    $region9: #{tpu_custom_call.1} parent=1 // pred_fallthru
      _
    // Predicated region
    $region10: #{tpu_custom_call.1} parent=1 // pred_check
      _
    $region11: #{tpu_custom_call.1} parent=1 // pred_check_branch
      %44 = sbr.rel (0) target = $region13
    $region12: #{tpu_custom_call.1} parent=1 // pred_region
      %s45 = sadd.s32 0, 0
      %s46 = smul.u32 2, %s45
      %s48 = ssub.s32 2048, 2048
      %49 = vsyncadd [#allocation7], %s48
      %s50 = smul.addr %s46, 128
      %s51 = scalar_lea.hbm %s2, %s50
      %s52 = sshll.u32 [#allocation8], 4
      %s53 = int_to_ptr.vmem [resolvable:$true] %s52
      %58 = dma.hbm_to_vmem [thread:$0]  %s51, 2048, %s53, [#allocation7], 256, 256, 16
    $region13: #{tpu_custom_call.1} parent=1 // pred_fallthru
      _
    // Predicated region
    $region14: #{tpu_custom_call.1} parent=1 // pred_check
      _
    $region15: #{tpu_custom_call.1} parent=1 // pred_check_branch
      %60 = sbr.rel (0) target = $region17
    $region16: #{tpu_custom_call.1} parent=1 // pred_region
      %61 = dma.done [#allocation4], 2048
    $region17: #{tpu_custom_call.1} parent=1 // pred_fallthru
      _
    // Predicated region
    $region18: #{tpu_custom_call.1} parent=1 // pred_check
      _
    $region19: #{tpu_custom_call.1} parent=1 // pred_check_branch
      %63 = sbr.rel (0) target = $region21
    $region20: #{tpu_custom_call.1} parent=1 // pred_region
      %64 = dma.done [#allocation7], 2048
    $region21: #{tpu_custom_call.1} parent=1 // pred_fallthru
      _
    // Predicated region
    $region22: #{tpu_custom_call.1} parent=1 // pred_check
      _
    $region23: #{tpu_custom_call.1} parent=1 // pred_check_branch
      %66 = sbr.rel (0) target = $region25
    $region24: #{tpu_custom_call.1} parent=1 // pred_region
      %67 = dma.done [#allocation7], 2048
    $region25: #{tpu_custom_call.1} parent=1 // pred_fallthru
      _
    %s68 = sadd.s32 0, 0
    %s69 = smul.u32 2, %s68
    %s70 = sadd.s32 0, 0
    %s71 = smul.u32 2, %s70
    %s72 = sadd.s32 0, 0
    %s73 = smul.u32 2, %s72
    %p74 = scmp.eq.s32.totalorder 0, 0
    // Predicated region
    $region26: #{tpu_custom_call.1} parent=1 // pred_check
      %p75 = pneg %p74
    $region27: #{tpu_custom_call.1} parent=1 // pred_check_branch
      %77 = sbr.rel (%p75) target = $region29
    $region28: #{tpu_custom_call.1} parent=1 // pred_region
      %78 = vst [vmem:[#allocation2] sm:$0xff] 0.0
      %79 = vst [vmem:[#allocation2 + $0x8] sm:$0xff] 0.0
      %80 = vst [vmem:[#allocation2 + $0x10] sm:$0xff] 0.0
      %81 = vst [vmem:[#allocation2 + $0x18] sm:$0xff] 0.0
      %82 = vst [vmem:[#allocation2 + $0x20] sm:$0xff] 0.0
      %83 = vst [vmem:[#allocation2 + $0x28] sm:$0xff] 0.0
      %84 = vst [vmem:[#allocation2 + $0x30] sm:$0xff] 0.0
      %85 = vst [vmem:[#allocation2 + $0x38] sm:$0xff] 0.0
    $region29: #{tpu_custom_call.1} parent=1 // pred_fallthru
      _
    %v86 = vld [vmem:[#allocation2] sm:$0xff]
    %v87 = vld [vmem:[#allocation2 + $0x8] sm:$0xff]
    %v88 = vld [vmem:[#allocation2 + $0x10] sm:$0xff]
    %v89 = vld [vmem:[#allocation2 + $0x18] sm:$0xff]
    %v90 = vld [vmem:[#allocation2 + $0x20] sm:$0xff]
    %v91 = vld [vmem:[#allocation2 + $0x28] sm:$0xff]
    %v92 = vld [vmem:[#allocation2 + $0x30] sm:$0xff]
    %v93 = vld [vmem:[#allocation2 + $0x38] sm:$0xff]
    %v94 = vld [vmem:[#allocation3] sm:$0xff]
    %v95 = vld [vmem:[#allocation3 + $0x10] sm:$0xff]
    %v96 = vld [vmem:[#allocation3 + $0x20] sm:$0xff]
    %v97 = vld [vmem:[#allocation3 + $0x30] sm:$0xff]
    %v98 = vld [vmem:[#allocation3 + $0x40] sm:$0xff]
    %v99 = vld [vmem:[#allocation3 + $0x50] sm:$0xff]
    %v100 = vld [vmem:[#allocation3 + $0x60] sm:$0xff]
    %v101 = vld [vmem:[#allocation3 + $0x70] sm:$0xff]
    %v102 = vld [vmem:[#allocation6] sm:$0xff]
    %v103 = vld [vmem:[#allocation6 + $0x10] sm:$0xff]
    %v104 = vld [vmem:[#allocation6 + $0x20] sm:$0xff]
    %v105 = vld [vmem:[#allocation6 + $0x30] sm:$0xff]
    %v106 = vld [vmem:[#allocation6 + $0x40] sm:$0xff]
    %v107 = vld [vmem:[#allocation6 + $0x50] sm:$0xff]
    %v108 = vld [vmem:[#allocation6 + $0x60] sm:$0xff]
    %v109 = vld [vmem:[#allocation6 + $0x70] sm:$0xff]
    %v110 = vadd.f32 %v94, %v102
    %v111 = vadd.f32 %v95, %v103
    %v112 = vadd.f32 %v96, %v104
    %v113 = vadd.f32 %v97, %v105
    %v114 = vadd.f32 %v98, %v106
    %v115 = vadd.f32 %v99, %v107
    %v116 = vadd.f32 %v100, %v108
    %v117 = vadd.f32 %v101, %v109
    %v118 = vld [vmem:[#allocation8] sm:$0xff]
    %v119 = vld [vmem:[#allocation8 + $0x10] sm:$0xff]
    %v120 = vld [vmem:[#allocation8 + $0x20] sm:$0xff]
    %v121 = vld [vmem:[#allocation8 + $0x30] sm:$0xff]
    %v122 = vld [vmem:[#allocation8 + $0x40] sm:$0xff]
    %v123 = vld [vmem:[#allocation8 + $0x50] sm:$0xff]
    %v124 = vld [vmem:[#allocation8 + $0x60] sm:$0xff]
    %v125 = vld [vmem:[#allocation8 + $0x70] sm:$0xff]
    %v126 = vadd.f32 %v110, %v118
    %v127 = vadd.f32 %v111, %v119
    %v128 = vadd.f32 %v112, %v120
    %v129 = vadd.f32 %v113, %v121
    %v130 = vadd.f32 %v114, %v122
    %v131 = vadd.f32 %v115, %v123
    %v132 = vadd.f32 %v116, %v124
    %v133 = vadd.f32 %v117, %v125
    %v134 = vadd.f32 %v86, %v126
    %v135 = vadd.f32 %v87, %v127
    %v136 = vadd.f32 %v88, %v128
    %v137 = vadd.f32 %v89, %v129
    %v138 = vadd.f32 %v90, %v130
    %v139 = vadd.f32 %v91, %v131
    %v140 = vadd.f32 %v92, %v132
    %v141 = vadd.f32 %v93, %v133
    %v142 = vld [vmem:[#allocation3 + $0x8] sm:$0xff]
    %v143 = vld [vmem:[#allocation3 + $0x18] sm:$0xff]
    %v144 = vld [vmem:[#allocation3 + $0x28] sm:$0xff]
    %v145 = vld [vmem:[#allocation3 + $0x38] sm:$0xff]
    %v146 = vld [vmem:[#allocation3 + $0x48] sm:$0xff]
    %v147 = vld [vmem:[#allocation3 + $0x58] sm:$0xff]
    %v148 = vld [vmem:[#allocation3 + $0x68] sm:$0xff]
    %v149 = vld [vmem:[#allocation3 + $0x78] sm:$0xff]
    %v150 = vld [vmem:[#allocation6 + $0x8] sm:$0xff]
    %v151 = vld [vmem:[#allocation6 + $0x18] sm:$0xff]
    %v152 = vld [vmem:[#allocation6 + $0x28] sm:$0xff]
    %v153 = vld [vmem:[#allocation6 + $0x38] sm:$0xff]
    %v154 = vld [vmem:[#allocation6 + $0x48] sm:$0xff]
    %v155 = vld [vmem:[#allocation6 + $0x58] sm:$0xff]
    %v156 = vld [vmem:[#allocation6 + $0x68] sm:$0xff]
    %v157 = vld [vmem:[#allocation6 + $0x78] sm:$0xff]
    %v158 = vadd.f32 %v142, %v150
    %v159 = vadd.f32 %v143, %v151
    %v160 = vadd.f32 %v144, %v152
    %v161 = vadd.f32 %v145, %v153
    %v162 = vadd.f32 %v146, %v154
    %v163 = vadd.f32 %v147, %v155
    %v164 = vadd.f32 %v148, %v156
    %v165 = vadd.f32 %v149, %v157
    %v166 = vld [vmem:[#allocation8 + $0x8] sm:$0xff]
    %v167 = vld [vmem:[#allocation8 + $0x18] sm:$0xff]
    %v168 = vld [vmem:[#allocation8 + $0x28] sm:$0xff]
    %v169 = vld [vmem:[#allocation8 + $0x38] sm:$0xff]
    %v170 = vld [vmem:[#allocation8 + $0x48] sm:$0xff]
    %v171 = vld [vmem:[#allocation8 + $0x58] sm:$0xff]
    %v172 = vld [vmem:[#allocation8 + $0x68] sm:$0xff]
    %v173 = vld [vmem:[#allocation8 + $0x78] sm:$0xff]
    %v174 = vadd.f32 %v158, %v166
    %v175 = vadd.f32 %v159, %v167
    %v176 = vadd.f32 %v160, %v168
    %v177 = vadd.f32 %v161, %v169
    %v178 = vadd.f32 %v162, %v170
    %v179 = vadd.f32 %v163, %v171
    %v180 = vadd.f32 %v164, %v172
    %v181 = vadd.f32 %v165, %v173
    %v182 = vadd.f32 %v134, %v174
    %v183 = vadd.f32 %v135, %v175
    %v184 = vadd.f32 %v136, %v176
    %v185 = vadd.f32 %v137, %v177
    %v186 = vadd.f32 %v138, %v178
    %v187 = vadd.f32 %v139, %v179
    %v188 = vadd.f32 %v140, %v180
    %v189 = vadd.f32 %v141, %v181
    %190 = vst [vmem:[#allocation2] sm:$0xff] %v182
    %191 = vst [vmem:[#allocation2 + $0x8] sm:$0xff] %v183
    %192 = vst [vmem:[#allocation2 + $0x10] sm:$0xff] %v184
    %193 = vst [vmem:[#allocation2 + $0x18] sm:$0xff] %v185
    %194 = vst [vmem:[#allocation2 + $0x20] sm:$0xff] %v186
    %195 = vst [vmem:[#allocation2 + $0x28] sm:$0xff] %v187
    %196 = vst [vmem:[#allocation2 + $0x30] sm:$0xff] %v188
    %197 = vst [vmem:[#allocation2 + $0x38] sm:$0xff] %v189
    // Predicated region
    $region30: #{tpu_custom_call.1} parent=1 // pred_check
      %p198 = pneg %p74
    $region31: #{tpu_custom_call.1} parent=1 // pred_check_branch
      %200 = sbr.rel (%p198) target = $region33
    $region32: #{tpu_custom_call.1} parent=1 // pred_region
      %v201 = vld [vmem:[#allocation2] sm:$0xff]
      %v202 = vld [vmem:[#allocation2 + $0x8] sm:$0xff]
      %v203 = vld [vmem:[#allocation2 + $0x10] sm:$0xff]
      %v204 = vld [vmem:[#allocation2 + $0x18] sm:$0xff]
      %v205 = vld [vmem:[#allocation2 + $0x20] sm:$0xff]
      %v206 = vld [vmem:[#allocation2 + $0x28] sm:$0xff]
      %v207 = vld [vmem:[#allocation2 + $0x30] sm:$0xff]
      %v208 = vld [vmem:[#allocation2 + $0x38] sm:$0xff]
      %209 = vadd.xlane.f32.xlu0 %v201
      %v210 = vpop.xlane.xlu0 %209
      %211 = vadd.xlane.f32.xlu0 %v202
      %v212 = vpop.xlane.xlu0 %211
      %213 = vadd.xlane.f32.xlu0 %v203
      %v214 = vpop.xlane.xlu0 %213
      %215 = vadd.xlane.f32.xlu0 %v204
      %v216 = vpop.xlane.xlu0 %215
      %217 = vadd.xlane.f32.xlu0 %v205
      %v218 = vpop.xlane.xlu0 %217
      %219 = vadd.xlane.f32.xlu0 %v206
      %v220 = vpop.xlane.xlu0 %219
      %221 = vadd.xlane.f32.xlu0 %v207
      %v222 = vpop.xlane.xlu0 %221
      %223 = vadd.xlane.f32.xlu0 %v208
      %v224 = vpop.xlane.xlu0 %223
      %v233 = vlaneseq
      %v234 = vand.u32 %v233, 127
      %v235 = vlaneseq
      %v236 = vshrl.u32 %v235, 7
      %v237 = vsub.s32 %v234, %v236
      %v238 = vrot.slane %v210, %v237
      %v239 = vadd.s32 %v234, 4294967288
      %v240 = vlaneseq
      %v241 = vshrl.u32 %v240, 7
      %v242 = vsub.s32 %v239, %v241
      %v243 = vrot.slane %v212, %v242
      %vm244 = vcmask 130112
      %v245 = vsel %vm244, %v243, %v238
      %v246 = vadd.s32 %v234, 4294967280
      %v247 = vlaneseq
      %v248 = vshrl.u32 %v247, 7
      %v249 = vsub.s32 %v246, %v248
      %v250 = vrot.slane %v214, %v249
      %vm251 = vcmask 195712
      %v252 = vsel %vm251, %v250, %v245
      %v253 = vadd.s32 %v234, 4294967272
      %v254 = vlaneseq
      %v255 = vshrl.u32 %v254, 7
      %v256 = vsub.s32 %v253, %v255
      %v257 = vrot.slane %v216, %v256
      %vm258 = vcmask 261312
      %v259 = vsel %vm258, %v257, %v252
      %v260 = vlaneseq
      %v261 = vshrl.u32 %v260, 7
      %v262 = vsub.s32 %v234, %v261
      %v263 = vrot.slane %v218, %v262
      %v264 = vlaneseq
      %v265 = vshrl.u32 %v264, 7
      %v266 = vsub.s32 %v239, %v265
      %v267 = vrot.slane %v220, %v266
      %v268 = vsel %vm244, %v267, %v263
      %v269 = vlaneseq
      %v270 = vshrl.u32 %v269, 7
      %v271 = vsub.s32 %v246, %v270
      %v272 = vrot.slane %v222, %v271
      %v273 = vsel %vm251, %v272, %v268
      %v274 = vlaneseq
      %v275 = vshrl.u32 %v274, 7
      %v276 = vsub.s32 %v253, %v275
      %v277 = vrot.slane %v224, %v276
      %v278 = vsel %vm258, %v277, %v273
      %vm279 = vcmask 1041409
      %v280 = vsel %vm279, %v278, %v259
      %vm282 = vcmask 254976
      %283 = vst.msk [vmem:[#allocation9] sm:$0x3] %vm282, %v280
    $region33: #{tpu_custom_call.1} parent=1 // pred_fallthru
      _
    // Predicated region
    $region34: #{tpu_custom_call.1} parent=1 // pred_check
      _
    $region35: #{tpu_custom_call.1} parent=1 // pred_check_branch
      %285 = sbr.rel (0) target = $region37
    $region36: #{tpu_custom_call.1} parent=1 // pred_region
      %s287 = ssub.s32 32, 32
      %288 = vsyncadd [#allocation5], %s287
      %s290 = sshll.u32 [#allocation9], 4
      %s291 = int_to_ptr.vmem [resolvable:$true] %s290
      %293 = dma.vmem_to_hbm [thread:$0]  %s291, 32, %s3, [#allocation5]
    $region37: #{tpu_custom_call.1} parent=1 // pred_fallthru
      _
    // Predicated region
    $region38: #{tpu_custom_call.1} parent=1 // pred_check
      _
    $region39: #{tpu_custom_call.1} parent=1 // pred_check_branch
      %295 = sbr.rel (0) target = $region41
    $region40: #{tpu_custom_call.1} parent=1 // pred_region
      %296 = dma.done [#allocation5], 32
    $region41: #{tpu_custom_call.1} parent=1 // pred_fallthru
      _
    %297 = vsyncpa [#allocation4], 1
    %298 = vsyncpa [#allocation7], 1
    %299 = vsyncpa [#allocation5], 1

</llo_original>
